<compile_context>
chip_gen: v5e
topology: v5e:2x2
jax: 0.10.0
libtpu: 0.0.40
codegen_flags: <defaults>
</compile_context>

<pallas_src>
import jax
import jax.numpy as jnp
from jax.experimental import pallas as pl
from jax.experimental.pallas import tpu as pltpu


# ---------------------------------------------------------------------------
# Pallas kernels: fused im2col-matmul + folded-BN bias + ReLU (+ residual)
# ---------------------------------------------------------------------------
def _conv_bn_relu_kernel(w_ref, p_ref, b_ref, out_ref):
    # w_ref  : (cout, K)   BN-scale-folded weights, K = cin*fs*fs
    # p_ref  : (K, tm)     im2col patches tile (tm lanes, multiple of 128)
    # b_ref  : (cout, 1)   folded bias (conv bias + BN shift)
    # out_ref: (cout, tm)
    y = jnp.dot(w_ref[...], p_ref[...],
                preferred_element_type=jnp.float32,
                precision=jax.lax.Precision.HIGHEST)
    y = y + b_ref[...]
    out_ref[...] = jnp.maximum(y, 0.0).astype(out_ref.dtype)


def _conv_bn_relu_res_kernel(w_ref, p_ref, b_ref, res_ref, out_ref):
    # Same as above, plus the residual add AFTER the ReLU (matches the module).
    y = jnp.dot(w_ref[...], p_ref[...],
                preferred_element_type=jnp.float32,
                precision=jax.lax.Precision.HIGHEST)
    y = y + b_ref[...]
    y = jnp.maximum(y, 0.0) + res_ref[...]
    out_ref[...] = y.astype(out_ref.dtype)


# ---------------------------------------------------------------------------
# Wrapper
# ---------------------------------------------------------------------------
def _choose_tile(m, max_tile=1024):
    """Largest lane-dense tile (multiple of 128) dividing m; prefer >=2 tiles
    so a 'parallel' grid axis exists for v7x's two TensorCores."""
    if m % 128 != 0:
        return m                                   # tiny inputs: full-extent block
    divs = [t for t in range(128, m + 1, 128) if m % t == 0]
    cands = [t for t in divs if t <= max_tile and m // t >= 2]
    if not cands:
        cands = [t for t in divs if t <= max_tile] or [m]
    return max(cands)


def conv_forward(x_nchw, w_folded, bias, fs, skip):
    """Forward pass of the `Conv` module (padding='same', stride=1, eval BN)."""
    n, cin, h, w = x_nchw.shape
    cout, k = w_folded.shape
    assert fs % 2 == 1, "padding='same' path assumes an odd filter size"
    assert k == cin * fs * fs
    pad = (fs - 1) // 2

    # --- im2col in the wrapper (lane-dense layout for the kernel) -----------
    x_pad = jnp.pad(x_nchw, ((0, 0), (0, 0), (pad, pad), (pad, pad)))
    cols = [x_pad[:, :, ky:ky + h, kx:kx + w]           # (n, cin, h, w) each
            for ky in range(fs) for kx in range(fs)]
    p = jnp.stack(cols, axis=0)                         # (fs*fs, n, cin, h, w)
    p = jnp.transpose(p, (2, 0, 1, 3, 4))               # (cin, fs*fs, n, h, w)
    patches = p.reshape(k, n * h * w).astype(jnp.float32)

    m = n * h * w
    tm = _choose_tile(m)
    grid = (m // tm,)

    in_specs = [
        pl.BlockSpec((cout, k), lambda i: (0, 0)),      # weights (resident)
        pl.BlockSpec((k, tm), lambda i: (0, i)),        # patches tile
        pl.BlockSpec((cout, 1), lambda i: (0, 0)),      # bias (resident)
    ]
    args = [w_folded, patches, bias]

    if skip:
        kernel = _conv_bn_relu_kernel                   # no zero-residual DMA
    else:
        assert cin == cout, "residual path requires fi == fo"
        res = jnp.transpose(x_nchw, (1, 0, 2, 3)).reshape(cout, m)
        in_specs.append(pl.BlockSpec((cout, tm), lambda i: (0, i)))
        args.append(res.astype(jnp.float32))
        kernel = _conv_bn_relu_res_kernel

    out = pl.pallas_call(
        kernel,
        out_shape=jax.ShapeDtypeStruct((cout, m), jnp.float32),
        grid=grid,
        in_specs=in_specs,
        out_specs=pl.BlockSpec((cout, tm), lambda i: (0, i)),
        compiler_params=pltpu.CompilerParams(
            dimension_semantics=("parallel",),           # megacore / v7x 2nd TC
            vmem_limit_bytes=32 * 1024 * 1024),          # safe on v7x 64 MiB VMEM
    )(*args)

    # (cout, n*h*w) -> NCHW
    return jnp.transpose(out.reshape(cout, n, h, w), (1, 0, 2, 3))


# ---------------------------------------------------------------------------
# Parameter packing: fold eval-mode BatchNorm into the conv weights / bias
# ---------------------------------------------------------------------------
def fold_conv_bn_params(w_oihw, conv_bias, gamma, beta, mean, var, eps=1e-5):
    """Returns (w_folded (cout, cin*fs*fs), bias (cout, 1)) with the BN scale
    absorbed per output channel; column order is (ci, ky, kx)."""
    cout = w_oihw.shape[0]
    scale = gamma / jnp.sqrt(var + eps)                          # (cout,)
    w2d = w_oihw.reshape(cout, -1)                               # cols: (ci,ky,kx)
    w_folded = (w2d * scale[:, None]).astype(jnp.float32)
    bias = (beta + (conv_bias - mean) * scale).reshape(cout, 1).astype(jnp.float32)
    return w_folded, bias


# ---------------------------------------------------------------------------
# Pure-JAX reference (for correctness check)
# ---------------------------------------------------------------------------
def _ref_conv_module(x, w, b, gamma, beta, mean, var, skip, eps=1e-5):
    y = jax.lax.conv_general_dilated(
        x, w, (1, 1), "SAME",
        dimension_numbers=("NCHW", "OIHW", "NCHW"),
        precision=jax.lax.Precision.HIGHEST)
    y = y + b[None, :, None, None]
    sc = (gamma / jnp.sqrt(var + eps))[None, :, None, None]
    y = (y - mean[None, :, None, None]) * sc + beta[None, :, None, None]
    y = jnp.maximum(y, 0.0)
    if not skip:
        y = y + x
    return y


# ---------------------------------------------------------------------------
if __name__ == "__main__":
    N, FI, FO, FS, H, W = 2, 4, 4, 3, 16, 16

    key = jax.random.PRNGKey(0)
    ks = jax.random.split(key, 7)
    kb = 1.0 / (FI * FS * FS) ** 0.5
    w = jax.random.uniform(ks[0], (FO, FI, FS, FS), jnp.float32, -kb, kb)
    b = jax.random.uniform(ks[1], (FO,), jnp.float32, -kb, kb)
    g = 1.0 + 0.1 * jax.random.normal(ks[2], (FO,), jnp.float32)
    be = 0.1 * jax.random.normal(ks[3], (FO,), jnp.float32)
    mu = 0.1 * jax.random.normal(ks[4], (FO,), jnp.float32)
    var = jax.random.uniform(ks[5], (FO,), jnp.float32, 0.5, 1.5)
    x = jax.random.normal(ks[6], (N, FI, H, W), jnp.float32)

    w_folded, bias = fold_conv_bn_params(w, b, g, be, mu, var)

    # Exercise both residual paths (both kernel variants).
    for skip in (False, True):
        out = jax.block_until_ready(conv_forward(x, w_folded, bias, FS, skip))
        ref = jax.block_until_ready(_ref_conv_module(x, w, b, g, be, mu, var, skip))
        assert out.shape == (N, FO, H, W) and out.dtype == jnp.float32
        err = float(jnp.max(jnp.abs(out - ref)))
        assert jnp.allclose(out, ref, atol=1e-4, rtol=1e-3), err

    print("KERNEL_OK")
</pallas_src>

<mosaic_0001>
module attributes {stable_mosaic.version = 11 : i64} {
  func.func @_conv_bn_relu_res_kernel(%arg0: i32, %arg1: memref<4x36xf32, #tpu.memory_space<vmem>>, %arg2: memref<36x256xf32, #tpu.memory_space<vmem>>, %arg3: memref<4x1xf32, #tpu.memory_space<vmem>>, %arg4: memref<4x256xf32, #tpu.memory_space<vmem>>, %arg5: memref<4x256xf32, #tpu.memory_space<vmem>>) attributes {dimension_semantics = [#tpu.dimension_semantics<parallel>], iteration_bounds = array<i64: 2>, scalar_prefetch = 0 : i64, scratch_operands = 0 : i64, tpu.core_type = #tpu.core_type<tc>, window_params = [{pipeline_mode = #tpu.pipeline_mode<synchronous>, transform_indices = @transform_0, window_bounds = array<i64: 4, 36>}, {transform_indices = @transform_1, window_bounds = array<i64: 36, 256>}, {pipeline_mode = #tpu.pipeline_mode<synchronous>, transform_indices = @transform_2, window_bounds = array<i64: 4, 1>}, {transform_indices = @transform_3, window_bounds = array<i64: 4, 256>}, {transform_indices = @transform_4, window_bounds = array<i64: 4, 256>}]} {
    %c0 = arith.constant 0 : index
    %c0_0 = arith.constant 0 : index
    %0 = vector.load %arg1[%c0, %c0_0] : memref<4x36xf32, #tpu.memory_space<vmem>>, vector<4x36xf32>
    %c0_1 = arith.constant 0 : index
    %c0_2 = arith.constant 0 : index
    %1 = vector.load %arg2[%c0_1, %c0_2] : memref<36x256xf32, #tpu.memory_space<vmem>>, vector<36x256xf32>
    %cst = arith.constant dense<0.000000e+00> : vector<4x256xf32>
    %2 = tpu.matmul %0, %1, %cst {dimension_numbers = #tpu.dot_dimension_numbers<[1], [0], [0], [1], [0, 0, 1, 1], [], []>, precision = #tpu.contract_precision<fp32>} : vector<4x36xf32>, vector<36x256xf32>, vector<4x256xf32> -> vector<4x256xf32>
    %c0_3 = arith.constant 0 : index
    %c0_4 = arith.constant 0 : index
    %3 = vector.load %arg3[%c0_3, %c0_4] : memref<4x1xf32, #tpu.memory_space<vmem>>, vector<4x1xf32>
    %4 = vector.broadcast %3 : vector<4x1xf32> to vector<4x256xf32>
    %5 = arith.addf %2, %4 : vector<4x256xf32>
    %cst_5 = arith.constant 0.000000e+00 : f32
    %6 = vector.broadcast %cst_5 : f32 to vector<4x256xf32>
    %7 = arith.maximumf %5, %6 : vector<4x256xf32>
    %c0_6 = arith.constant 0 : index
    %c0_7 = arith.constant 0 : index
    %8 = vector.load %arg4[%c0_6, %c0_7] : memref<4x256xf32, #tpu.memory_space<vmem>>, vector<4x256xf32>
    %9 = arith.addf %7, %8 : vector<4x256xf32>
    %c0_8 = arith.constant 0 : index
    %c0_9 = arith.constant 0 : index
    %10 = vector.load %arg5[%c0_8, %c0_9] : memref<4x256xf32, #tpu.memory_space<vmem>>, vector<4x256xf32>
    tpu.vector_store %arg5[%c0_8, %c0_9], %9 {strides = array<i32>} : memref<4x256xf32, #tpu.memory_space<vmem>>, vector<4x256xf32>,
    return
  }
  func.func @transform_0(%arg0: i32) -> (i32, i32) {
    %c0_i32 = arith.constant 0 : i32
    %c0_i32_0 = arith.constant 0 : i32
    %c0_i32_1 = arith.constant 0 : i32
    return %c0_i32, %c0_i32_0 : i32, i32
  }
  func.func @transform_1(%arg0: i32) -> (i32, i32) {
    %c0_i32 = arith.constant 0 : i32
    %c0_i32_0 = arith.constant 0 : i32
    return %c0_i32, %arg0 : i32, i32
  }
  func.func @transform_2(%arg0: i32) -> (i32, i32) {
    %c0_i32 = arith.constant 0 : i32
    %c0_i32_0 = arith.constant 0 : i32
    %c0_i32_1 = arith.constant 0 : i32
    return %c0_i32, %c0_i32_0 : i32, i32
  }
  func.func @transform_3(%arg0: i32) -> (i32, i32) {
    %c0_i32 = arith.constant 0 : i32
    %c0_i32_0 = arith.constant 0 : i32
    return %c0_i32, %arg0 : i32, i32
  }
  func.func @transform_4(%arg0: i32) -> (i32, i32) {
    %c0_i32 = arith.constant 0 : i32
    %c0_i32_0 = arith.constant 0 : i32
    return %c0_i32, %arg0 : i32, i32
  }
}

</mosaic_0001>

<llo_original>
// kernel: tpu_custom_call.1
$region0: #{tpu_custom_call.1}
  #allocation0 [shape = 'u32[]', space=smem, size = 0x4, offset = 0x4, fixed_abs, tag = 'smem constant byte address 0x4 - core index']
  #allocation1 [shape = 'u32[72,128]{1,0:T(1,128)}', space=vmem, size = 0x9000, scoped, tag = 'internal scratch']
  %s0 = inlined_call_operand.vmem [shape: f32[4,36], index: 0, kind: input, shape index: {}]
  %s1 = inlined_call_operand.hbm [shape: f32[36,512], index: 1, kind: input, shape index: {}]
  %s2 = inlined_call_operand.vmem [shape: f32[4,1], index: 2, kind: input, shape index: {}]
  %s3 = inlined_call_operand.hbm [shape: f32[4,512], index: 3, kind: input, shape index: {}]
  %s4 = inlined_call_operand.hbm [shape: f32[4,512], index: 4, kind: output, shape index: {}]
  %s5 = sld [smem:[#allocation0]]
  $region57: #{tpu_custom_call.1} parent=0
    _
  %s7 = ssub.s32 1, %s5
  %s8 = scalar_select 0, %s7, %s5
  $region1: #{tpu_custom_call.1} parent=0
    #allocation2 [shape = 'u8[81920]{0}', space=vmem, size = 0x14000, scoped, tag = 'input window, operand 1']
    #allocation3 [shape = 's32[2]{0}', space=sflag, size = 0x8, scoped, tag = 'scoped memory for tpu_custom_call.1']
    #allocation4 [shape = 's32[2]{0}', space=sflag, size = 0x8, scoped, tag = 'scoped memory for tpu_custom_call.1']
    #allocation5 [shape = 'u8[8192]{0}', space=vmem, size = 0x2000, scoped, tag = 'input window, operand 3']
    #allocation6 [shape = 's32[2]{0}', space=sflag, size = 0x8, scoped, tag = 'scoped memory for tpu_custom_call.1']
    #allocation7 [shape = 'u8[8192]{0}', space=vmem, size = 0x2000, scoped, tag = 'output window, operand 0']
    %9 = vsyncpa [#allocation3], 0
    %s10 = scalar_lea.sflag [#allocation3], 1
    %11 = vsyncpa %s10, 0
    %12 = vsyncpa [#allocation6], 0
    %s13 = scalar_lea.sflag [#allocation6], 1
    %14 = vsyncpa %s13, 0
    %15 = vsyncpa [#allocation4], 0
    %s16 = scalar_lea.sflag [#allocation4], 1
    %17 = vsyncpa %s16, 0
    loop: start=0, step=1, limit=4
    $region2: #{tpu_custom_call.1} parent=1 // loop_pre_header
      _
    $region3: #{tpu_custom_call.1} parent=1 // loop_header
      %s19 = sphi 0, %s23
      %p20 = scmp.ge.s32.totalorder %s19, 4
      %s27 = sphi 0, %s27
      %s29 = sphi 0, %s27
      %s30 = sphi 0, %s29
      %s44 = sphi 0, %s30
      %s50 = sphi 0, %s52
      %s53 = sphi 0, %s50
      %s54 = sphi 0, %s53
      %s70 = sphi 0, %s54
      %s74 = sphi 0, %s74
      %s76 = sphi 0, %s74
      %s77 = sphi 0, %s76
      %s91 = sphi 0, %s77
      %s97 = sphi 0, %s99
      %s100 = sphi 0, %s97
      %s101 = sphi 0, %s100
      %s117 = sphi 0, %s101
      %s123 = sphi 0, %s125
      %s126 = sphi 0, %s123
      %s127 = sphi 0, %s126
      %s143 = sphi 0, %s127
    $region4: #{tpu_custom_call.1} parent=1 // loop_header_branch
      %22 = sbr.rel (%p20) target = $region8
    $region5: #{tpu_custom_call.1} parent=1 // loop_body
      %s24 = ssub.s32 %s19, 1
      %s25 = ssub.s32 %s19, 2
      %s26 = sadd.s32 %s19, 1
      %s28 = sadd.s32 %s27, 1
      %p31 = scmp.eq.s32.totalorder %s19, 1
      %p32 = scmp.ne.s32.totalorder %s27, %s29
      %p33 = scmp.eq.s32.totalorder %s19, 0
      %p34 = por %p32, %p33
      %p35 = scmp.ne.s32.totalorder %s27, %s29
      %p36 = scmp.eq.s32.totalorder %s24, 1
      %p37 = por %p35, %p36
      %p38 = scmp.ne.s32.totalorder %s29, %s30
      %p39 = scmp.eq.s32.totalorder %s24, 0
      %p40 = por %p38, %p39
      %p41 = scmp.ne.s32.totalorder %s29, %s30
      %p42 = scmp.eq.s32.totalorder %s25, 1
      %p43 = por %p41, %p42
      %p45 = scmp.ne.s32.totalorder %s30, %s44
      %p46 = scmp.eq.s32.totalorder %s25, 0
      %p47 = por %p45, %p46
      %s48 = ssub.s32 %s19, %s26
      %p49 = scmp.eq.s32.totalorder %s48, 0
      %s51 = sadd.s32 %s50, 1
      %s52 = scalar_select %p49, %s50, %s51
      %p55 = pneg %p49
      %p56 = scmp.eq.s32.totalorder %s19, 1
      %p57 = por %p55, %p56
      %p58 = scmp.ne.s32.totalorder %s50, %s53
      %p59 = scmp.eq.s32.totalorder %s19, 0
      %p60 = por %p58, %p59
      %p61 = scmp.ne.s32.totalorder %s50, %s53
      %p62 = scmp.eq.s32.totalorder %s24, 1
      %p63 = por %p61, %p62
      %p64 = scmp.ne.s32.totalorder %s53, %s54
      %p65 = scmp.eq.s32.totalorder %s24, 0
      %p66 = por %p64, %p65
      %p67 = scmp.ne.s32.totalorder %s53, %s54
      %p68 = scmp.eq.s32.totalorder %s25, 1
      %p69 = por %p67, %p68
      %p71 = scmp.ne.s32.totalorder %s54, %s70
      %p72 = scmp.eq.s32.totalorder %s25, 0
      %p73 = por %p71, %p72
      %s75 = sadd.s32 %s74, 1
      %p78 = scmp.eq.s32.totalorder %s19, 1
      %p79 = scmp.ne.s32.totalorder %s74, %s76
      %p80 = scmp.eq.s32.totalorder %s19, 0
      %p81 = por %p79, %p80
      %p82 = scmp.ne.s32.totalorder %s74, %s76
      %p83 = scmp.eq.s32.totalorder %s24, 1
      %p84 = por %p82, %p83
      %p85 = scmp.ne.s32.totalorder %s76, %s77
      %p86 = scmp.eq.s32.totalorder %s24, 0
      %p87 = por %p85, %p86
      %p88 = scmp.ne.s32.totalorder %s76, %s77
      %p89 = scmp.eq.s32.totalorder %s25, 1
      %p90 = por %p88, %p89
      %p92 = scmp.ne.s32.totalorder %s77, %s91
      %p93 = scmp.eq.s32.totalorder %s25, 0
      %p94 = por %p92, %p93
      %s95 = ssub.s32 %s19, %s26
      %p96 = scmp.eq.s32.totalorder %s95, 0
      %s98 = sadd.s32 %s97, 1
      %s99 = scalar_select %p96, %s97, %s98
      %p102 = pneg %p96
      %p103 = scmp.eq.s32.totalorder %s19, 1
      %p104 = por %p102, %p103
      %p105 = scmp.ne.s32.totalorder %s97, %s100
      %p106 = scmp.eq.s32.totalorder %s19, 0
      %p107 = por %p105, %p106
      %p108 = scmp.ne.s32.totalorder %s97, %s100
      %p109 = scmp.eq.s32.totalorder %s24, 1
      %p110 = por %p108, %p109
      %p111 = scmp.ne.s32.totalorder %s100, %s101
      %p112 = scmp.eq.s32.totalorder %s24, 0
      %p113 = por %p111, %p112
      %p114 = scmp.ne.s32.totalorder %s100, %s101
      %p115 = scmp.eq.s32.totalorder %s25, 1
      %p116 = por %p114, %p115
      %p118 = scmp.ne.s32.totalorder %s101, %s117
      %p119 = scmp.eq.s32.totalorder %s25, 0
      %p120 = por %p118, %p119
      %s121 = ssub.s32 %s19, %s26
      %p122 = scmp.eq.s32.totalorder %s121, 0
      %s124 = sadd.s32 %s123, 1
      %s125 = scalar_select %p122, %s123, %s124
      %p128 = pneg %p122
      %p129 = scmp.eq.s32.totalorder %s19, 1
      %p130 = por %p128, %p129
      %p131 = scmp.ne.s32.totalorder %s123, %s126
      %p132 = scmp.eq.s32.totalorder %s19, 0
      %p133 = por %p131, %p132
      %p134 = scmp.ne.s32.totalorder %s123, %s126
      %p135 = scmp.eq.s32.totalorder %s24, 1
      %p136 = por %p134, %p135
      %p137 = scmp.ne.s32.totalorder %s126, %s127
      %p138 = scmp.eq.s32.totalorder %s24, 0
      %p139 = por %p137, %p138
      %p140 = scmp.ne.s32.totalorder %s126, %s127
      %p141 = scmp.eq.s32.totalorder %s25, 1
      %p142 = por %p140, %p141
      %p144 = scmp.ne.s32.totalorder %s127, %s143
      %p145 = scmp.eq.s32.totalorder %s25, 0
      %p146 = por %p144, %p145
      %p147 = scmp.le.s32.totalorder 1, %s19
      %p148 = scmp.lt.s32.totalorder %s19, 3
      %p149 = pnand %p147, %p148
      %p150 = pneg %p149
      // Predicated region
      $region9: #{tpu_custom_call.1} parent=5 // pred_check
        _
      $region10: #{tpu_custom_call.1} parent=5 // pred_check_branch
        %152 = sbr.rel (%p149) target = $region12
      $region11: #{tpu_custom_call.1} parent=5 // pred_region
        %s153 = ssub.s32 %s19, 1
        // Predicated region
        $region13: #{tpu_custom_call.1} parent=11 // pred_check
          %p154 = pneg %p40
        $region14: #{tpu_custom_call.1} parent=11 // pred_check_branch
          %156 = sbr.rel (%p154) target = $region16
        $region15: #{tpu_custom_call.1} parent=11 // pred_region
          _
        $region16: #{tpu_custom_call.1} parent=11 // pred_fallthru
          _
        // Predicated region
        $region17: #{tpu_custom_call.1} parent=11 // pred_check
          %p157 = pneg %p87
        $region18: #{tpu_custom_call.1} parent=11 // pred_check_branch
          %159 = sbr.rel (%p157) target = $region20
        $region19: #{tpu_custom_call.1} parent=11 // pred_region
          _
        $region20: #{tpu_custom_call.1} parent=11 // pred_fallthru
          _
      $region12: #{tpu_custom_call.1} parent=5 // pred_fallthru
        _
      %p160 = scmp.lt.s32.totalorder %s19, 2
      // Predicated region
      $region21: #{tpu_custom_call.1} parent=5 // pred_check
        %p161 = pneg %p160
      $region22: #{tpu_custom_call.1} parent=5 // pred_check_branch
        %163 = sbr.rel (%p161) target = $region24
      $region23: #{tpu_custom_call.1} parent=5 // pred_region
        // Predicated region
        $region25: #{tpu_custom_call.1} parent=23 // pred_check
          %p164 = pneg %p60
        $region26: #{tpu_custom_call.1} parent=23 // pred_check_branch
          %166 = sbr.rel (%p164) target = $region28
        $region27: #{tpu_custom_call.1} parent=23 // pred_region
          %s167 = sand.u32 %s50, 1
          %s168 = scalar_lea.sflag [#allocation3], %s167
          %s169 = sand.u32 %s50, 1
          %s170 = smul.addr %s169, 80
          %s171 = scalar_lea.vmem [#allocation2], %s170
          %s172 = smul.u32 2, %s19
          %174 = vsyncadd %s168, 0
          %s175 = smul.addr %s172, 8
          %s176 = scalar_lea.hbm %s1, %s175
          %s177 = sshll.u32 %s176, 4
          %s178 = int_to_ptr.hbm [resolvable:$true] %s177
          %s179 = sshll.u32 %s171, 4
          %s180 = int_to_ptr.vmem [resolvable:$true] %s179
          %185 = dma.hbm_to_vmem [thread:$0]  %s178, 1280, %s180, %s168, 512, 256, 16
        $region28: #{tpu_custom_call.1} parent=23 // pred_fallthru
          _
        // Predicated region
        $region29: #{tpu_custom_call.1} parent=23 // pred_check
          %p186 = pneg %p107
        $region30: #{tpu_custom_call.1} parent=23 // pred_check_branch
          %188 = sbr.rel (%p186) target = $region32
        $region31: #{tpu_custom_call.1} parent=23 // pred_region
          %s189 = sand.u32 %s97, 1
          %s190 = scalar_lea.sflag [#allocation6], %s189
          %s191 = sand.u32 %s97, 1
          %s192 = smul.addr %s191, 8
          %s193 = scalar_lea.vmem [#allocation5], %s192
          %s194 = smul.u32 2, %s19
          %196 = vsyncadd %s190, 0
          %s197 = smul.addr %s194, 4
          %s198 = scalar_lea.hbm %s3, %s197
          %s200 = sshll.u32 %s198, 4
          %s201 = int_to_ptr.hbm [resolvable:$true] %s200
          %s202 = sshll.u32 %s193, 4
          %s203 = int_to_ptr.vmem [resolvable:$true] %s202
          %205 = dma.hbm_to_vmem [thread:$0]  %s201, 128, %s203, %s190
        $region32: #{tpu_custom_call.1} parent=23 // pred_fallthru
          _
      $region24: #{tpu_custom_call.1} parent=5 // pred_fallthru
        _
      %p206 = scmp.le.s32.totalorder 1, %s19
      %p207 = scmp.lt.s32.totalorder %s19, 3
      %p208 = pnand %p206, %p207
      %p209 = pneg %p208
      // Predicated region
      $region33: #{tpu_custom_call.1} parent=5 // pred_check
        _
      $region34: #{tpu_custom_call.1} parent=5 // pred_check_branch
        %211 = sbr.rel (%p208) target = $region36
      $region35: #{tpu_custom_call.1} parent=5 // pred_region
        %s212 = ssub.s32 %s19, 1
        %s213 = sand.u32 %s53, 1
        %s214 = scalar_lea.sflag [#allocation3], %s213
        %s215 = sand.u32 %s53, 1
        %s216 = smul.addr %s215, 80
        %s217 = scalar_lea.vmem [#allocation2], %s216
        // Predicated region
        $region37: #{tpu_custom_call.1} parent=35 // pred_check
          %p218 = pneg %p66
        $region38: #{tpu_custom_call.1} parent=35 // pred_check_branch
          %220 = sbr.rel (%p218) target = $region40
        $region39: #{tpu_custom_call.1} parent=35 // pred_region
          %222 = dma.done %s214, 1280
        $region40: #{tpu_custom_call.1} parent=35 // pred_fallthru
          _
        %s223 = sand.u32 %s100, 1
        %s224 = scalar_lea.sflag [#allocation6], %s223
        %s225 = sand.u32 %s100, 1
        %s226 = smul.addr %s225, 8
        %s227 = scalar_lea.vmem [#allocation5], %s226
        // Predicated region
        $region41: #{tpu_custom_call.1} parent=35 // pred_check
          %p228 = pneg %p113
        $region42: #{tpu_custom_call.1} parent=35 // pred_check_branch
          %230 = sbr.rel (%p228) target = $region44
        $region43: #{tpu_custom_call.1} parent=35 // pred_region
          %232 = dma.done %s224, 128
        $region44: #{tpu_custom_call.1} parent=35 // pred_fallthru
          _
        %p233 = pneg %p40
        %p234 = pneg %p37
        %s235 = sand.u32 %s53, 1
        %s236 = scalar_lea.sflag [#allocation3], %s235
        %s237 = sand.u32 %s53, 1
        %s238 = smul.addr %s237, 80
        %s239 = scalar_lea.vmem [#allocation2], %s238
        %p240 = pneg %p66
        %p241 = pneg %p63
        %p242 = pneg %p87
        %p243 = pneg %p84
        %s244 = sand.u32 %s100, 1
        %s245 = scalar_lea.sflag [#allocation6], %s244
        %s246 = sand.u32 %s100, 1
        %s247 = smul.addr %s246, 8
        %s248 = scalar_lea.vmem [#allocation5], %s247
        %p249 = pneg %p113
        %p250 = pneg %p110
        %p251 = pneg %p139
        %p252 = pneg %p136
        %s253 = sand.u32 %s126, 1
        %s254 = scalar_lea.sflag [#allocation4], %s253
        %s255 = sand.u32 %s126, 1
        %s256 = smul.addr %s255, 8
        %s257 = scalar_lea.vmem [#allocation7], %s256
        %s258 = smul.u32 2, %s24
        %s259 = smul.u32 2, %s24
        %s260 = smul.u32 2, %s24
        %v261 = vld [vmem:[%s0] sm:$0xf]
        %v262 = vld [vmem:[%s217] sm:$0xff]
        %v263 = vld [vmem:[%s217 + $0x8] sm:$0xff]
        %v264 = vld [vmem:[%s217 + $0x10] sm:$0xff]
        %v265 = vld [vmem:[%s217 + $0x18] sm:$0xff]
        %v266 = vld [vmem:[%s217 + $0x20] sm:$0xff]
        %v267 = vld [vmem:[%s217 + $0x28] sm:$0xff]
        %v268 = vld [vmem:[%s217 + $0x30] sm:$0xff]
        %v269 = vld [vmem:[%s217 + $0x38] sm:$0xff]
        %v270 = vld [vmem:[%s217 + $0x40] sm:$0xf]
        %v271 = vld [vmem:[%s217 + $0x48] sm:$0xf]
        %v272 = vld [vmem:[%s2] sm:$0xf]
        %274 = vset.pattern.permute.xlu0 0
        %275 = vperm.xlu0 %274, %v272
        %v276 = vpop.permute.xlu0 %275
        %vm278 = vcmask 293888
        %v280 = vsel %vm278, %v261, 0
        %vm282 = vcmask 1043456
        %v284 = vsel %vm282, %v270, 0
        %v287 = vsel %vm282, %v271, 0
        %289 = vmatpush.msra.mxu0 0.0
        %290 = vmatpush.msra.mxu0 0.0
        %291 = vmatpush.msra.mxu0 0.0
        %292 = vmatpush.msra.mxu0 0.0
        %293 = vmatpush.msra.mxu0 0.0
        %294 = vmatpush.msra.mxu0 0.0
        %295 = vmatpush.msra.mxu0 0.0
        %296 = vmatpush.msra.mxu0 0.0
        %297 = vmatpush.msra.mxu0 0.0
        %298 = vmatpush.msra.mxu0 0.0
        %299 = vmatpush.msra.mxu0 0.0
        %v300 = vand.u32 %v284, 4294901760
        %301 = vmatpush.msra.mxu0 %v300
        %v302 = vand.u32 %v268, 4294901760
        %303 = vmatpush.msra.mxu0 %v302
        %v304 = vand.u32 %v266, 4294901760
        %305 = vmatpush.msra.mxu0 %v304
        %v306 = vand.u32 %v264, 4294901760
        %307 = vmatpush.msra.mxu0 %v306
        %v308 = vand.u32 %v262, 4294901760
        %309 = vmatpush.msra.mxu0 %v308
        %v310 = vand.u32 %v280, 4294901760
        %v311 = vsub.f32 %v280, %v310
        %v312 = vand.u32 %v311, 4294901760
        %v313 = vsub.f32 %v311, %v312
        %v314 = vand.u32 %v313, 4294901760
        %315 = vmatmul.f32.gmra.mxu0 %v314
        %v316 = vpop.f32.mrf.mxu0
        %v317 = vadd.f32 %v276, %v316
        %318 = vdwg.mxu0
        %319 = vmatpush.msra.mxu0 0.0
        %320 = vmatpush.msra.mxu0 0.0
        %321 = vmatpush.msra.mxu0 0.0
        %322 = vmatpush.msra.mxu0 0.0
        %323 = vmatpush.msra.mxu0 0.0
        %324 = vmatpush.msra.mxu0 0.0
        %325 = vmatpush.msra.mxu0 0.0
        %326 = vmatpush.msra.mxu0 0.0
        %327 = vmatpush.msra.mxu0 0.0
        %328 = vmatpush.msra.mxu0 0.0
        %329 = vmatpush.msra.mxu0 0.0
        %v330 = vand.u32 %v284, 4294901760
        %v331 = vsub.f32 %v284, %v330
        %v332 = vand.u32 %v331, 4294901760
        %v333 = vsub.f32 %v331, %v332
        %v334 = vand.u32 %v333, 4294901760
        %335 = vmatpush.msra.mxu0 %v334
        %v336 = vand.u32 %v268, 4294901760
        %v337 = vsub.f32 %v268, %v336
        %v338 = vand.u32 %v337, 4294901760
        %v339 = vsub.f32 %v337, %v338
        %v340 = vand.u32 %v339, 4294901760
        %341 = vmatpush.msra.mxu0 %v340
        %v342 = vand.u32 %v266, 4294901760
        %v343 = vsub.f32 %v266, %v342
        %v344 = vand.u32 %v343, 4294901760
        %v345 = vsub.f32 %v343, %v344
        %v346 = vand.u32 %v345, 4294901760
        %347 = vmatpush.msra.mxu0 %v346
        %v348 = vand.u32 %v264, 4294901760
        %v349 = vsub.f32 %v264, %v348
        %v350 = vand.u32 %v349, 4294901760
        %v351 = vsub.f32 %v349, %v350
        %v352 = vand.u32 %v351, 4294901760
        %353 = vmatpush.msra.mxu0 %v352
        %v354 = vand.u32 %v262, 4294901760
        %v355 = vsub.f32 %v262, %v354
        %v356 = vand.u32 %v355, 4294901760
        %v357 = vsub.f32 %v355, %v356
        %v358 = vand.u32 %v357, 4294901760
        %359 = vmatpush.msra.mxu0 %v358
        %v360 = vand.u32 %v280, 4294901760
        %361 = vmatmul.f32.gmra.mxu0 %v360
        %v362 = vpop.f32.mrf.mxu0
        %v363 = vadd.f32 %v317, %v362
        %364 = vdwg.mxu0
        %365 = vmatpush.msra.mxu0 0.0
        %366 = vmatpush.msra.mxu0 0.0
        %367 = vmatpush.msra.mxu0 0.0
        %368 = vmatpush.msra.mxu0 0.0
        %369 = vmatpush.msra.mxu0 0.0
        %370 = vmatpush.msra.mxu0 0.0
        %371 = vmatpush.msra.mxu0 0.0
        %372 = vmatpush.msra.mxu0 0.0
        %373 = vmatpush.msra.mxu0 0.0
        %374 = vmatpush.msra.mxu0 0.0
        %375 = vmatpush.msra.mxu0 0.0
        %v376 = vand.u32 %v284, 4294901760
        %v377 = vsub.f32 %v284, %v376
        %378 = vmatpush.msra.mxu0 %v377
        %v379 = vand.u32 %v268, 4294901760
        %v380 = vsub.f32 %v268, %v379
        %381 = vmatpush.msra.mxu0 %v380
        %v382 = vand.u32 %v266, 4294901760
        %v383 = vsub.f32 %v266, %v382
        %384 = vmatpush.msra.mxu0 %v383
        %v385 = vand.u32 %v264, 4294901760
        %v386 = vsub.f32 %v264, %v385
        %387 = vmatpush.msra.mxu0 %v386
        %v388 = vand.u32 %v262, 4294901760
        %v389 = vsub.f32 %v262, %v388
        %390 = vmatpush.msra.mxu0 %v389
        %v391 = vand.u32 %v280, 4294901760
        %v392 = vsub.f32 %v280, %v391
        %393 = vmatmul.f32.gmra.mxu0 %v392
        %v394 = vpop.f32.mrf.mxu0
        %v395 = vadd.f32 %v363, %v394
        %396 = vdwg.mxu0
        %397 = vmatpush.msra.mxu0 0.0
        %398 = vmatpush.msra.mxu0 0.0
        %399 = vmatpush.msra.mxu0 0.0
        %400 = vmatpush.msra.mxu0 0.0
        %401 = vmatpush.msra.mxu0 0.0
        %402 = vmatpush.msra.mxu0 0.0
        %403 = vmatpush.msra.mxu0 0.0
        %404 = vmatpush.msra.mxu0 0.0
        %405 = vmatpush.msra.mxu0 0.0
        %406 = vmatpush.msra.mxu0 0.0
        %407 = vmatpush.msra.mxu0 0.0
        %v408 = vand.u32 %v284, 4294901760
        %409 = vmatpush.msra.mxu0 %v408
        %v410 = vand.u32 %v268, 4294901760
        %411 = vmatpush.msra.mxu0 %v410
        %v412 = vand.u32 %v266, 4294901760
        %413 = vmatpush.msra.mxu0 %v412
        %v414 = vand.u32 %v264, 4294901760
        %415 = vmatpush.msra.mxu0 %v414
        %v416 = vand.u32 %v262, 4294901760
        %417 = vmatpush.msra.mxu0 %v416
        %v418 = vand.u32 %v280, 4294901760
        %v419 = vsub.f32 %v280, %v418
        %v420 = vand.u32 %v419, 4294901760
        %421 = vmatmul.f32.gmra.mxu0 %v420
        %v422 = vpop.f32.mrf.mxu0
        %v423 = vadd.f32 %v395, %v422
        %424 = vdwg.mxu0
        %425 = vmatpush.msra.mxu0 0.0
        %426 = vmatpush.msra.mxu0 0.0
        %427 = vmatpush.msra.mxu0 0.0
        %428 = vmatpush.msra.mxu0 0.0
        %429 = vmatpush.msra.mxu0 0.0
        %430 = vmatpush.msra.mxu0 0.0
        %431 = vmatpush.msra.mxu0 0.0
        %432 = vmatpush.msra.mxu0 0.0
        %433 = vmatpush.msra.mxu0 0.0
        %434 = vmatpush.msra.mxu0 0.0
        %435 = vmatpush.msra.mxu0 0.0
        %v436 = vand.u32 %v284, 4294901760
        %v437 = vsub.f32 %v284, %v436
        %v438 = vand.u32 %v437, 4294901760
        %439 = vmatpush.msra.mxu0 %v438
        %v440 = vand.u32 %v268, 4294901760
        %v441 = vsub.f32 %v268, %v440
        %v442 = vand.u32 %v441, 4294901760
        %443 = vmatpush.msra.mxu0 %v442
        %v444 = vand.u32 %v266, 4294901760
        %v445 = vsub.f32 %v266, %v444
        %v446 = vand.u32 %v445, 4294901760
        %447 = vmatpush.msra.mxu0 %v446
        %v448 = vand.u32 %v264, 4294901760
        %v449 = vsub.f32 %v264, %v448
        %v450 = vand.u32 %v449, 4294901760
        %451 = vmatpush.msra.mxu0 %v450
        %v452 = vand.u32 %v262, 4294901760
        %v453 = vsub.f32 %v262, %v452
        %v454 = vand.u32 %v453, 4294901760
        %455 = vmatpush.msra.mxu0 %v454
        %v456 = vand.u32 %v280, 4294901760
        %457 = vmatmul.f32.gmra.mxu0 %v456
        %v458 = vpop.f32.mrf.mxu0
        %v459 = vadd.f32 %v423, %v458
        %460 = vdwg.mxu0
        %461 = vmatpush.msra.mxu0 0.0
        %462 = vmatpush.msra.mxu0 0.0
        %463 = vmatpush.msra.mxu0 0.0
        %464 = vmatpush.msra.mxu0 0.0
        %465 = vmatpush.msra.mxu0 0.0
        %466 = vmatpush.msra.mxu0 0.0
        %467 = vmatpush.msra.mxu0 0.0
        %468 = vmatpush.msra.mxu0 0.0
        %469 = vmatpush.msra.mxu0 0.0
        %470 = vmatpush.msra.mxu0 0.0
        %471 = vmatpush.msra.mxu0 0.0
        %v472 = vand.u32 %v284, 4294901760
        %473 = vmatpush.msra.mxu0 %v472
        %v474 = vand.u32 %v268, 4294901760
        %475 = vmatpush.msra.mxu0 %v474
        %v476 = vand.u32 %v266, 4294901760
        %477 = vmatpush.msra.mxu0 %v476
        %v478 = vand.u32 %v264, 4294901760
        %479 = vmatpush.msra.mxu0 %v478
        %v480 = vand.u32 %v262, 4294901760
        %481 = vmatpush.msra.mxu0 %v480
        %v482 = vand.u32 %v280, 4294901760
        %483 = vmatmul.f32.gmra.mxu0 %v482
        %v484 = vpop.f32.mrf.mxu0
        %v485 = vadd.f32 %v459, %v484
        %486 = vdwg.mxu0
        %487 = vmatpush.msra.mxu0 0.0
        %488 = vmatpush.msra.mxu0 0.0
        %489 = vmatpush.msra.mxu0 0.0
        %490 = vmatpush.msra.mxu0 0.0
        %491 = vmatpush.msra.mxu0 0.0
        %492 = vmatpush.msra.mxu0 0.0
        %493 = vmatpush.msra.mxu0 0.0
        %494 = vmatpush.msra.mxu0 0.0
        %495 = vmatpush.msra.mxu0 0.0
        %496 = vmatpush.msra.mxu0 0.0
        %497 = vmatpush.msra.mxu0 0.0
        %v498 = vand.u32 %v287, 4294901760
        %499 = vmatpush.msra.mxu0 %v498
        %v500 = vand.u32 %v269, 4294901760
        %501 = vmatpush.msra.mxu0 %v500
        %v502 = vand.u32 %v267, 4294901760
        %503 = vmatpush.msra.mxu0 %v502
        %v504 = vand.u32 %v265, 4294901760
        %505 = vmatpush.msra.mxu0 %v504
        %v506 = vand.u32 %v263, 4294901760
        %507 = vmatpush.msra.mxu0 %v506
        %v508 = vand.u32 %v280, 4294901760
        %v509 = vsub.f32 %v280, %v508
        %v510 = vand.u32 %v509, 4294901760
        %v511 = vsub.f32 %v509, %v510
        %v512 = vand.u32 %v511, 4294901760
        %513 = vmatmul.f32.gmra.mxu0 %v512
        %v514 = vpop.f32.mrf.mxu0
        %v515 = vadd.f32 %v276, %v514
        %516 = vdwg.mxu0
        %517 = vmatpush.msra.mxu0 0.0
        %518 = vmatpush.msra.mxu0 0.0
        %519 = vmatpush.msra.mxu0 0.0
        %520 = vmatpush.msra.mxu0 0.0
        %521 = vmatpush.msra.mxu0 0.0
        %522 = vmatpush.msra.mxu0 0.0
        %523 = vmatpush.msra.mxu0 0.0
        %524 = vmatpush.msra.mxu0 0.0
        %525 = vmatpush.msra.mxu0 0.0
        %526 = vmatpush.msra.mxu0 0.0
        %527 = vmatpush.msra.mxu0 0.0
        %v528 = vand.u32 %v287, 4294901760
        %v529 = vsub.f32 %v287, %v528
        %v530 = vand.u32 %v529, 4294901760
        %v531 = vsub.f32 %v529, %v530
        %v532 = vand.u32 %v531, 4294901760
        %533 = vmatpush.msra.mxu0 %v532
        %v534 = vand.u32 %v269, 4294901760
        %v535 = vsub.f32 %v269, %v534
        %v536 = vand.u32 %v535, 4294901760
        %v537 = vsub.f32 %v535, %v536
        %v538 = vand.u32 %v537, 4294901760
        %539 = vmatpush.msra.mxu0 %v538
        %v540 = vand.u32 %v267, 4294901760
        %v541 = vsub.f32 %v267, %v540
        %v542 = vand.u32 %v541, 4294901760
        %v543 = vsub.f32 %v541, %v542
        %v544 = vand.u32 %v543, 4294901760
        %545 = vmatpush.msra.mxu0 %v544
        %v546 = vand.u32 %v265, 4294901760
        %v547 = vsub.f32 %v265, %v546
        %v548 = vand.u32 %v547, 4294901760
        %v549 = vsub.f32 %v547, %v548
        %v550 = vand.u32 %v549, 4294901760
        %551 = vmatpush.msra.mxu0 %v550
        %v552 = vand.u32 %v263, 4294901760
        %v553 = vsub.f32 %v263, %v552
        %v554 = vand.u32 %v553, 4294901760
        %v555 = vsub.f32 %v553, %v554
        %v556 = vand.u32 %v555, 4294901760
        %557 = vmatpush.msra.mxu0 %v556
        %v558 = vand.u32 %v280, 4294901760
        %559 = vmatmul.f32.gmra.mxu0 %v558
        %v560 = vpop.f32.mrf.mxu0
        %v561 = vadd.f32 %v515, %v560
        %562 = vdwg.mxu0
        %563 = vmatpush.msra.mxu0 0.0
        %564 = vmatpush.msra.mxu0 0.0
        %565 = vmatpush.msra.mxu0 0.0
        %566 = vmatpush.msra.mxu0 0.0
        %567 = vmatpush.msra.mxu0 0.0
        %568 = vmatpush.msra.mxu0 0.0
        %569 = vmatpush.msra.mxu0 0.0
        %570 = vmatpush.msra.mxu0 0.0
        %571 = vmatpush.msra.mxu0 0.0
        %572 = vmatpush.msra.mxu0 0.0
        %573 = vmatpush.msra.mxu0 0.0
        %v574 = vand.u32 %v287, 4294901760
        %v575 = vsub.f32 %v287, %v574
        %576 = vmatpush.msra.mxu0 %v575
        %v577 = vand.u32 %v269, 4294901760
        %v578 = vsub.f32 %v269, %v577
        %579 = vmatpush.msra.mxu0 %v578
        %v580 = vand.u32 %v267, 4294901760
        %v581 = vsub.f32 %v267, %v580
        %582 = vmatpush.msra.mxu0 %v581
        %v583 = vand.u32 %v265, 4294901760
        %v584 = vsub.f32 %v265, %v583
        %585 = vmatpush.msra.mxu0 %v584
        %v586 = vand.u32 %v263, 4294901760
        %v587 = vsub.f32 %v263, %v586
        %588 = vmatpush.msra.mxu0 %v587
        %v589 = vand.u32 %v280, 4294901760
        %v590 = vsub.f32 %v280, %v589
        %591 = vmatmul.f32.gmra.mxu0 %v590
        %v592 = vpop.f32.mrf.mxu0
        %v593 = vadd.f32 %v561, %v592
        %594 = vdwg.mxu0
        %595 = vmatpush.msra.mxu0 0.0
        %596 = vmatpush.msra.mxu0 0.0
        %597 = vmatpush.msra.mxu0 0.0
        %598 = vmatpush.msra.mxu0 0.0
        %599 = vmatpush.msra.mxu0 0.0
        %600 = vmatpush.msra.mxu0 0.0
        %601 = vmatpush.msra.mxu0 0.0
        %602 = vmatpush.msra.mxu0 0.0
        %603 = vmatpush.msra.mxu0 0.0
        %604 = vmatpush.msra.mxu0 0.0
        %605 = vmatpush.msra.mxu0 0.0
        %v606 = vand.u32 %v287, 4294901760
        %607 = vmatpush.msra.mxu0 %v606
        %v608 = vand.u32 %v269, 4294901760
        %609 = vmatpush.msra.mxu0 %v608
        %v610 = vand.u32 %v267, 4294901760
        %611 = vmatpush.msra.mxu0 %v610
        %v612 = vand.u32 %v265, 4294901760
        %613 = vmatpush.msra.mxu0 %v612
        %v614 = vand.u32 %v263, 4294901760
        %615 = vmatpush.msra.mxu0 %v614
        %v616 = vand.u32 %v280, 4294901760
        %v617 = vsub.f32 %v280, %v616
        %v618 = vand.u32 %v617, 4294901760
        %619 = vmatmul.f32.gmra.mxu0 %v618
        %v620 = vpop.f32.mrf.mxu0
        %v621 = vadd.f32 %v593, %v620
        %622 = vdwg.mxu0
        %623 = vmatpush.msra.mxu0 0.0
        %624 = vmatpush.msra.mxu0 0.0
        %625 = vmatpush.msra.mxu0 0.0
        %626 = vmatpush.msra.mxu0 0.0
        %627 = vmatpush.msra.mxu0 0.0
        %628 = vmatpush.msra.mxu0 0.0
        %629 = vmatpush.msra.mxu0 0.0
        %630 = vmatpush.msra.mxu0 0.0
        %631 = vmatpush.msra.mxu0 0.0
        %632 = vmatpush.msra.mxu0 0.0
        %633 = vmatpush.msra.mxu0 0.0
        %v634 = vand.u32 %v287, 4294901760
        %v635 = vsub.f32 %v287, %v634
        %v636 = vand.u32 %v635, 4294901760
        %637 = vmatpush.msra.mxu0 %v636
        %v638 = vand.u32 %v269, 4294901760
        %v639 = vsub.f32 %v269, %v638
        %v640 = vand.u32 %v639, 4294901760
        %641 = vmatpush.msra.mxu0 %v640
        %v642 = vand.u32 %v267, 4294901760
        %v643 = vsub.f32 %v267, %v642
        %v644 = vand.u32 %v643, 4294901760
        %645 = vmatpush.msra.mxu0 %v644
        %v646 = vand.u32 %v265, 4294901760
        %v647 = vsub.f32 %v265, %v646
        %v648 = vand.u32 %v647, 4294901760
        %649 = vmatpush.msra.mxu0 %v648
        %v650 = vand.u32 %v263, 4294901760
        %v651 = vsub.f32 %v263, %v650
        %v652 = vand.u32 %v651, 4294901760
        %653 = vmatpush.msra.mxu0 %v652
        %v654 = vand.u32 %v280, 4294901760
        %655 = vmatmul.f32.gmra.mxu0 %v654
        %v656 = vpop.f32.mrf.mxu0
        %v657 = vadd.f32 %v621, %v656
        %658 = vdwg.mxu0
        %659 = vmatpush.msra.mxu0 0.0
        %660 = vmatpush.msra.mxu0 0.0
        %661 = vmatpush.msra.mxu0 0.0
        %662 = vmatpush.msra.mxu0 0.0
        %663 = vmatpush.msra.mxu0 0.0
        %664 = vmatpush.msra.mxu0 0.0
        %665 = vmatpush.msra.mxu0 0.0
        %666 = vmatpush.msra.mxu0 0.0
        %667 = vmatpush.msra.mxu0 0.0
        %668 = vmatpush.msra.mxu0 0.0
        %669 = vmatpush.msra.mxu0 0.0
        %v670 = vand.u32 %v287, 4294901760
        %671 = vmatpush.msra.mxu0 %v670
        %v672 = vand.u32 %v269, 4294901760
        %673 = vmatpush.msra.mxu0 %v672
        %v674 = vand.u32 %v267, 4294901760
        %675 = vmatpush.msra.mxu0 %v674
        %v676 = vand.u32 %v265, 4294901760
        %677 = vmatpush.msra.mxu0 %v676
        %v678 = vand.u32 %v263, 4294901760
        %679 = vmatpush.msra.mxu0 %v678
        %v680 = vand.u32 %v280, 4294901760
        %681 = vmatmul.f32.gmra.mxu0 %v680
        %v682 = vpop.f32.mrf.mxu0
        %v683 = vadd.f32 %v657, %v682
        %684 = vdwg.mxu0
        %v685 = vmax.f32 %v485, 0.0
        %v686 = vmax.f32 %v683, 0.0
        %v687 = vld [vmem:[%s227] sm:$0xff]
        %689 = vst [vmem:[#allocation1] ss:$2 sm:$0xff] %v687
        %v690 = vld.sshfl [vmem:[#allocation1] sm:$0xff pattern:$0x75316420]
        %v691 = vld.sshfl [vmem:[#allocation1 + $0x8] sm:$0xff pattern:$0x75316420]
        %v694 = vadd.f32 %v685, %v690
        %v695 = vadd.f32 %v686, %v691
        %v698 = vrot.slane %v695, 4
        %v699 = vsel %vm282, %v694, %v698
        %701 = vst [vmem:[%s257] sm:$0xff] %v699
        %s702 = sand.u32 %s126, 1
        %s703 = scalar_lea.sflag [#allocation4], %s702
        %s704 = sand.u32 %s126, 1
        %s705 = smul.addr %s704, 8
        %s706 = scalar_lea.vmem [#allocation7], %s705
        // Predicated region
        $region45: #{tpu_custom_call.1} parent=35 // pred_check
          %p707 = pneg %p136
        $region46: #{tpu_custom_call.1} parent=35 // pred_check_branch
          %709 = sbr.rel (%p707) target = $region48
        $region47: #{tpu_custom_call.1} parent=35 // pred_region
          %s710 = smul.u32 2, %s24
          %712 = vsyncadd %s703, 0
          %s713 = smul.addr %s710, 4
          %s714 = scalar_lea.hbm %s4, %s713
          %s716 = sshll.u32 %s706, 4
          %s717 = int_to_ptr.vmem [resolvable:$true] %s716
          %s718 = sshll.u32 %s714, 4
          %s719 = int_to_ptr.hbm [resolvable:$true] %s718
          %721 = dma.vmem_to_hbm [thread:$0]  %s717, 128, %s719, %s703
        $region48: #{tpu_custom_call.1} parent=35 // pred_fallthru
          _
      $region36: #{tpu_custom_call.1} parent=5 // pred_fallthru
        _
      %p722 = scmp.le.s32.totalorder 2, %s19
      // Predicated region
      $region49: #{tpu_custom_call.1} parent=5 // pred_check
        %p723 = pneg %p722
      $region50: #{tpu_custom_call.1} parent=5 // pred_check_branch
        %725 = sbr.rel (%p723) target = $region52
      $region51: #{tpu_custom_call.1} parent=5 // pred_region
        %s726 = ssub.s32 %s19, 2
        // Predicated region
        $region53: #{tpu_custom_call.1} parent=51 // pred_check
          %p727 = pneg %p142
        $region54: #{tpu_custom_call.1} parent=51 // pred_check_branch
          %729 = sbr.rel (%p727) target = $region56
        $region55: #{tpu_custom_call.1} parent=51 // pred_region
          %s730 = sand.u32 %s127, 1
          %s731 = scalar_lea.sflag [#allocation4], %s730
          %s732 = sand.u32 %s127, 1
          %s733 = smul.addr %s732, 8
          %s734 = scalar_lea.vmem [#allocation7], %s733
          %736 = dma.done %s731, 128
        $region56: #{tpu_custom_call.1} parent=51 // pred_fallthru
          _
      $region52: #{tpu_custom_call.1} parent=5 // pred_fallthru
        _
    $region6: #{tpu_custom_call.1} parent=1 // loop_footer
      %s23 = sadd.s32 1, %s19
    $region7: #{tpu_custom_call.1} parent=1 // loop_footer_branch
      %18 = sbr.rel target = $region3
    $region8: #{tpu_custom_call.1} parent=1 // loop_exit
      _
    %737 = vsyncpa [#allocation3], 1
    %s738 = scalar_lea.sflag [#allocation3], 1
    %739 = vsyncpa %s738, 1
    %740 = vsyncpa [#allocation6], 1
    %s741 = scalar_lea.sflag [#allocation6], 1
    %742 = vsyncpa %s741, 1
    %743 = vsyncpa [#allocation4], 1
    %s744 = scalar_lea.sflag [#allocation4], 1
    %745 = vsyncpa %s744, 1

</llo_original>
